<compile_context>
chip_gen: v6e
topology: v6e:2x2x1
jax: 0.10.0
libtpu: 0.0.40
codegen_flags: <defaults>
</compile_context>

<pallas_src>
import functools

import jax
import jax.numpy as jnp
from jax.experimental import pallas as pl
from jax.experimental.pallas import tpu as pltpu

H = 64  # hidden width (fixed by the module definition)


def _round_up(x, m):
    return pl.cdiv(x, m) * m


def ppo_fused_kernel(x_ref, w1_ref, w2_ref, wh_ref, b_ref, out_ref):
    h = w1_ref.shape[1]           # 64 (static)
    head_w = out_ref.shape[1]     # padded (mean | value) width (static)

    # Shared trunk: Linear -> ReLU -> Linear -> ReLU.
    # bf16 operands into the MXU, f32 accumulation, f32 bias/ReLU.
    x = x_ref[...].astype(jnp.bfloat16)
    b1 = b_ref[0:1, 0:h]          # (1, 64)     f32
    b2 = b_ref[1:2, 0:h]          # (1, 64)     f32
    bh = b_ref[2:3, 0:head_w]     # (1, head_w) f32 (zero padded)

    h1 = jnp.dot(x, w1_ref[...], preferred_element_type=jnp.float32) + b1
    h1 = jnp.maximum(h1, 0.0).astype(jnp.bfloat16)
    h2 = jnp.dot(h1, w2_ref[...], preferred_element_type=jnp.float32) + b2
    h2 = jnp.maximum(h2, 0.0).astype(jnp.bfloat16)

    # Fused (policy_mean | value | zero-pad) head. f32 accumulate, bf16 store
    # (halves writeback; precision already limited by bf16 MXU operands).
    out = jnp.dot(h2, wh_ref[...], preferred_element_type=jnp.float32) + bh
    out_ref[...] = out.astype(out_ref.dtype)


def _pack_params(params, head_w):
    """Pack the 8 weight/bias tensors into 4 DMA-friendly resident slabs."""
    wm, wv = params["wm"], params["wv"]
    b1, b2, bm, bv = params["b1"], params["b2"], params["bm"], params["bv"]
    A = wm.shape[1]
    assert A + 1 <= head_w, "fused head pad too narrow for num_actions + 1"

    w1 = params["w1"].astype(jnp.bfloat16)                 # (D, 64)
    w2 = params["w2"].astype(jnp.bfloat16)                 # (64, 64)

    # Fused head (64, head_w): cols [0:A]=mean head, [A]=value head, rest 0.
    wh = jnp.zeros((H, head_w), jnp.float32)
    wh = wh.at[:, :A].set(wm).at[:, A:A + 1].set(wv)
    wh = wh.astype(jnp.bfloat16)

    # All biases in one small f32 slab.
    wb = max(H, head_w)
    b = jnp.zeros((3, wb), jnp.float32)
    b = b.at[0, :H].set(b1[0]).at[1, :H].set(b2[0])
    b = b.at[2, :A].set(bm[0]).at[2, A:A + 1].set(bv[0])
    return w1, w2, wh, b


@functools.partial(jax.jit, static_argnames=("tile_b",))
def ppo_forward(x, params, tile_b=4096):
    B, D = x.shape
    A = params["wm"].shape[1]
    # Narrow padded head: only the useful lanes (+ sublane alignment) hit HBM.
    # TODO(synk): on v5e, A/B against a 128-lane bf16 output (1 vst slot makes
    # masked partial stores relatively pricier there).
    HEAD_W = _round_up(A + 1, 8)

    w1, w2, wh, b = _pack_params(params, HEAD_W)

    # Batch tiling: big tiles to amortize per-step overhead, but keep >=2 grid
    # steps for non-trivial batches so both v7x TensorCores are used.
    n_steps = max(2, pl.cdiv(B, tile_b)) if B > 16 else 1
    TILE_B = _round_up(pl.cdiv(B, n_steps), 8)
    grid = (pl.cdiv(B, TILE_B),)   # ragged last block: OOB rows masked/dropped

    flops = 2 * B * (D * H + H * H + H * HEAD_W)
    bytes_accessed = (x.size * 4 + w1.size * 2 + w2.size * 2 + wh.size * 2
                      + b.size * 4 + B * HEAD_W * 2)

    # VMEM estimate (lane dims pad to 128 in VMEM, double-buffered x and out).
    vmem_needed = 2 * TILE_B * 128 * (4 + 2) + (2 << 20)
    vmem_limit = None if vmem_needed <= (16 << 20) else min(vmem_needed, 48 << 20)

    out = pl.pallas_call(
        ppo_fused_kernel,
        out_shape=jax.ShapeDtypeStruct((B, HEAD_W), jnp.bfloat16),
        grid_spec=pltpu.PrefetchScalarGridSpec(
            num_scalar_prefetch=0,
            grid=grid,
            in_specs=[
                pl.BlockSpec((TILE_B, D), lambda i: (i, 0)),        # x tile
                pl.BlockSpec((D, H), lambda i: (0, 0)),             # w1 (resident)
                pl.BlockSpec((H, H), lambda i: (0, 0)),             # w2 (resident)
                pl.BlockSpec((H, HEAD_W), lambda i: (0, 0)),        # fused head
                pl.BlockSpec((3, max(H, HEAD_W)), lambda i: (0, 0)),  # biases
            ],
            out_specs=pl.BlockSpec((TILE_B, HEAD_W), lambda i: (i, 0)),
        ),
        compiler_params=pltpu.CompilerParams(
            dimension_semantics=("parallel",),
            vmem_limit_bytes=vmem_limit),
        cost_estimate=pl.CostEstimate(
            flops=flops, transcendentals=0, bytes_accessed=bytes_accessed),
    )(x, w1, w2, wh, b)

    policy_mean = out[:, :A].astype(jnp.float32)
    value = out[:, A:A + 1].astype(jnp.float32)
    # policy_log_std.expand_as(policy_mean): pure parameter broadcast -> wrapper.
    policy_log_std = jnp.broadcast_to(params["log_std"], (B, A))
    return policy_mean, policy_log_std, value


def init_params(key, input_dim, num_actions, hidden=H):
    """PyTorch-default-style Linear init (uniform +-1/sqrt(fan_in)); log_std=0."""
    ks = jax.random.split(key, 8)

    def lin(kw, kb, fan_in, fan_out):
        bound = 1.0 / jnp.sqrt(fan_in)
        w = jax.random.uniform(kw, (fan_in, fan_out), jnp.float32, -bound, bound)
        b = jax.random.uniform(kb, (1, fan_out), jnp.float32, -bound, bound)
        return w, b

    w1, b1 = lin(ks[0], ks[1], input_dim, hidden)
    w2, b2 = lin(ks[2], ks[3], hidden, hidden)
    wm, bm = lin(ks[4], ks[5], hidden, num_actions)
    wv, bv = lin(ks[6], ks[7], hidden, 1)
    log_std = jnp.zeros((1, num_actions), jnp.float32)
    return dict(w1=w1, b1=b1, w2=w2, b2=b2, wm=wm, bm=bm,
                log_std=log_std, wv=wv, bv=bv)


def ppo_forward_ref(x, p):
    """Pure-JAX f32 reference of the PyTorch forward."""
    h = jnp.maximum(x @ p["w1"] + p["b1"], 0.0)
    h = jnp.maximum(h @ p["w2"] + p["b2"], 0.0)
    mean = h @ p["wm"] + p["bm"]
    log_std = jnp.broadcast_to(p["log_std"], mean.shape)
    value = h @ p["wv"] + p["bv"]
    return mean, log_std, value


if __name__ == "__main__":
    key = jax.random.PRNGKey(0)
    k_params, k_x = jax.random.split(key)

    batch, input_dim, num_actions = 8, 16, 4
    params = init_params(k_params, input_dim, num_actions)
    x = jax.random.normal(k_x, (batch, input_dim), jnp.float32)

    mean, log_std, value = jax.block_until_ready(ppo_forward(x, params))

    mean_r, log_std_r, value_r = ppo_forward_ref(x, params)
    assert mean.shape == (batch, num_actions)
    assert log_std.shape == (batch, num_actions)
    assert value.shape == (batch, 1)
    # bf16 MXU operands + bf16 output store (f32 accumulation) -> relaxed tol.
    assert jnp.allclose(mean, mean_r, atol=5e-2, rtol=5e-2)
    assert jnp.allclose(log_std, log_std_r, atol=1e-6)
    assert jnp.allclose(value, value_r, atol=5e-2, rtol=5e-2)

    print("KERNEL_OK")
</pallas_src>

<mosaic_0001>
module attributes {stable_mosaic.version = 11 : i64} {
  func.func @ppo_fused_kernel(%arg0: i32, %arg1: memref<8x16xf32, #tpu.memory_space<vmem>>, %arg2: memref<16x64xbf16, #tpu.memory_space<vmem>>, %arg3: memref<64x64xbf16, #tpu.memory_space<vmem>>, %arg4: memref<64x8xbf16, #tpu.memory_space<vmem>>, %arg5: memref<3x64xf32, #tpu.memory_space<vmem>>, %arg6: memref<8x8xbf16, #tpu.memory_space<vmem>>) attributes {dimension_semantics = [#tpu.dimension_semantics<parallel>], iteration_bounds = array<i64: 1>, scalar_prefetch = 0 : i64, scratch_operands = 0 : i64, tpu.core_type = #tpu.core_type<tc>, window_params = [{transform_indices = @transform_0, window_bounds = array<i64: 8, 16>}, {pipeline_mode = #tpu.pipeline_mode<synchronous>, transform_indices = @transform_1, window_bounds = array<i64: 16, 64>}, {pipeline_mode = #tpu.pipeline_mode<synchronous>, transform_indices = @transform_2, window_bounds = array<i64: 64, 64>}, {pipeline_mode = #tpu.pipeline_mode<synchronous>, transform_indices = @transform_3, window_bounds = array<i64: 64, 8>}, {pipeline_mode = #tpu.pipeline_mode<synchronous>, transform_indices = @transform_4, window_bounds = array<i64: 3, 64>}, {transform_indices = @transform_5, window_bounds = array<i64: 8, 8>}]} {
    %c0 = arith.constant 0 : index
    %c0_0 = arith.constant 0 : index
    %0 = vector.load %arg1[%c0, %c0_0] : memref<8x16xf32, #tpu.memory_space<vmem>>, vector<8x16xf32>
    %1 = arith.truncf %0 : vector<8x16xf32> to vector<8x16xbf16>
    %c0_1 = arith.constant 0 : index
    %c0_2 = arith.constant 0 : index
    %2 = vector.load %arg5[%c0_1, %c0_2] : memref<3x64xf32, #tpu.memory_space<vmem>>, vector<1x64xf32>
    %c1 = arith.constant 1 : index
    %c0_3 = arith.constant 0 : index
    %3 = vector.load %arg5[%c1, %c0_3] : memref<3x64xf32, #tpu.memory_space<vmem>>, vector<1x64xf32>
    %c2 = arith.constant 2 : index
    %c0_4 = arith.constant 0 : index
    %4 = vector.load %arg5[%c2, %c0_4] : memref<3x64xf32, #tpu.memory_space<vmem>>, vector<1x8xf32>
    %c0_5 = arith.constant 0 : index
    %c0_6 = arith.constant 0 : index
    %5 = vector.load %arg2[%c0_5, %c0_6] : memref<16x64xbf16, #tpu.memory_space<vmem>>, vector<16x64xbf16>
    %cst = arith.constant dense<0.000000e+00> : vector<8x64xf32>
    %6 = tpu.matmul %1, %5, %cst {dimension_numbers = #tpu.dot_dimension_numbers<[1], [0], [0], [1], [0, 0, 1, 1], [], []>} : vector<8x16xbf16>, vector<16x64xbf16>, vector<8x64xf32> -> vector<8x64xf32>
    %7 = vector.broadcast %2 : vector<1x64xf32> to vector<8x64xf32>
    %8 = arith.addf %6, %7 : vector<8x64xf32>
    %cst_7 = arith.constant 0.000000e+00 : f32
    %9 = vector.broadcast %cst_7 : f32 to vector<8x64xf32>
    %10 = arith.maximumf %8, %9 : vector<8x64xf32>
    %11 = arith.truncf %10 : vector<8x64xf32> to vector<8x64xbf16>
    %c0_8 = arith.constant 0 : index
    %c0_9 = arith.constant 0 : index
    %12 = vector.load %arg3[%c0_8, %c0_9] : memref<64x64xbf16, #tpu.memory_space<vmem>>, vector<64x64xbf16>
    %cst_10 = arith.constant dense<0.000000e+00> : vector<8x64xf32>
    %13 = tpu.matmul %11, %12, %cst_10 {dimension_numbers = #tpu.dot_dimension_numbers<[1], [0], [0], [1], [0, 0, 1, 1], [], []>} : vector<8x64xbf16>, vector<64x64xbf16>, vector<8x64xf32> -> vector<8x64xf32>
    %14 = vector.broadcast %3 : vector<1x64xf32> to vector<8x64xf32>
    %15 = arith.addf %13, %14 : vector<8x64xf32>
    %cst_11 = arith.constant 0.000000e+00 : f32
    %16 = vector.broadcast %cst_11 : f32 to vector<8x64xf32>
    %17 = arith.maximumf %15, %16 : vector<8x64xf32>
    %18 = arith.truncf %17 : vector<8x64xf32> to vector<8x64xbf16>
    %c0_12 = arith.constant 0 : index
    %c0_13 = arith.constant 0 : index
    %19 = vector.load %arg4[%c0_12, %c0_13] : memref<64x8xbf16, #tpu.memory_space<vmem>>, vector<64x8xbf16>
    %cst_14 = arith.constant dense<0.000000e+00> : vector<8x8xf32>
    %20 = tpu.matmul %18, %19, %cst_14 {dimension_numbers = #tpu.dot_dimension_numbers<[1], [0], [0], [1], [0, 0, 1, 1], [], []>} : vector<8x64xbf16>, vector<64x8xbf16>, vector<8x8xf32> -> vector<8x8xf32>
    %21 = vector.broadcast %4 : vector<1x8xf32> to vector<8x8xf32>
    %22 = arith.addf %20, %21 : vector<8x8xf32>
    %23 = arith.truncf %22 : vector<8x8xf32> to vector<8x8xbf16>
    %c0_15 = arith.constant 0 : index
    %c0_16 = arith.constant 0 : index
    %24 = vector.load %arg6[%c0_15, %c0_16] : memref<8x8xbf16, #tpu.memory_space<vmem>>, vector<8x8xbf16>
    tpu.vector_store %arg6[%c0_15, %c0_16], %23 {strides = array<i32>} : memref<8x8xbf16, #tpu.memory_space<vmem>>, vector<8x8xbf16>,
    return
  }
  func.func @transform_0(%arg0: i32) -> (i32, i32) {
    %c0_i32 = arith.constant 0 : i32
    %c0_i32_0 = arith.constant 0 : i32
    return %arg0, %c0_i32 : i32, i32
  }
  func.func @transform_1(%arg0: i32) -> (i32, i32) {
    %c0_i32 = arith.constant 0 : i32
    %c0_i32_0 = arith.constant 0 : i32
    %c0_i32_1 = arith.constant 0 : i32
    return %c0_i32, %c0_i32_0 : i32, i32
  }
  func.func @transform_2(%arg0: i32) -> (i32, i32) {
    %c0_i32 = arith.constant 0 : i32
    %c0_i32_0 = arith.constant 0 : i32
    %c0_i32_1 = arith.constant 0 : i32
    return %c0_i32, %c0_i32_0 : i32, i32
  }
  func.func @transform_3(%arg0: i32) -> (i32, i32) {
    %c0_i32 = arith.constant 0 : i32
    %c0_i32_0 = arith.constant 0 : i32
    %c0_i32_1 = arith.constant 0 : i32
    return %c0_i32, %c0_i32_0 : i32, i32
  }
  func.func @transform_4(%arg0: i32) -> (i32, i32) {
    %c0_i32 = arith.constant 0 : i32
    %c0_i32_0 = arith.constant 0 : i32
    %c0_i32_1 = arith.constant 0 : i32
    return %c0_i32, %c0_i32_0 : i32, i32
  }
  func.func @transform_5(%arg0: i32) -> (i32, i32) {
    %c0_i32 = arith.constant 0 : i32
    %c0_i32_0 = arith.constant 0 : i32
    return %arg0, %c0_i32 : i32, i32
  }
}

</mosaic_0001>

<llo_original>
// kernel: ppo_forward.1
$region0: #{ppo_forward.1}
  #allocation0 [shape = 'u32[]', space=smem, size = 0x4, offset = 0x4, fixed_abs, tag = 'smem constant byte address 0x4 - core index']
  #allocation1 [shape = 'u32[144,128]{1,0:T(1,128)}', space=vmem, size = 0x12000, scoped, tag = 'internal scratch']
  %s0 = inlined_call_operand.vmem [shape: f32[8,16], index: 0, kind: input, shape index: {}]
  %s1 = inlined_call_operand.vmem [shape: bf16[16,64], index: 1, kind: input, shape index: {}]
  %s2 = inlined_call_operand.vmem [shape: bf16[64,64], index: 2, kind: input, shape index: {}]
  %s3 = inlined_call_operand.vmem [shape: bf16[64,8], index: 3, kind: input, shape index: {}]
  %s4 = inlined_call_operand.vmem [shape: f32[3,64], index: 4, kind: input, shape index: {}]
  %s5 = inlined_call_operand.vmem [shape: bf16[8,8], index: 5, kind: output, shape index: {}]
  %s6 = sld [smem:[#allocation0]]
  $region30: #{ppo_forward.1} parent=0
    _
  %s8 = ssub.s32 1, %s6
  %s9 = scalar_select 0, %s8, %s6
  // Predicated region
  $region2: #{ppo_forward.1} parent=0 // pred_check
    _
  $region3: #{ppo_forward.1} parent=0 // pred_check_branch
    %11 = sbr.rel (0) target = $region5
  $region4: #{ppo_forward.1} parent=0 // pred_region
    _
  $region5: #{ppo_forward.1} parent=0 // pred_fallthru
    _
  // Predicated region
  $region6: #{ppo_forward.1} parent=0 // pred_check
    _
  $region7: #{ppo_forward.1} parent=0 // pred_check_branch
    %13 = sbr.rel (0) target = $region9
  $region8: #{ppo_forward.1} parent=0 // pred_region
    _
  $region9: #{ppo_forward.1} parent=0 // pred_fallthru
    _
  // Predicated region
  $region10: #{ppo_forward.1} parent=0 // pred_check
    _
  $region11: #{ppo_forward.1} parent=0 // pred_check_branch
    %15 = sbr.rel (0) target = $region13
  $region12: #{ppo_forward.1} parent=0 // pred_region
    _
  $region13: #{ppo_forward.1} parent=0 // pred_fallthru
    _
  // Predicated region
  $region14: #{ppo_forward.1} parent=0 // pred_check
    _
  $region15: #{ppo_forward.1} parent=0 // pred_check_branch
    %17 = sbr.rel (0) target = $region17
  $region16: #{ppo_forward.1} parent=0 // pred_region
    _
  $region17: #{ppo_forward.1} parent=0 // pred_fallthru
    _
  // Predicated region
  $region18: #{ppo_forward.1} parent=0 // pred_check
    _
  $region19: #{ppo_forward.1} parent=0 // pred_check_branch
    %19 = sbr.rel (0) target = $region21
  $region20: #{ppo_forward.1} parent=0 // pred_region
    _
  $region21: #{ppo_forward.1} parent=0 // pred_fallthru
    _
  %v21 = vld [vmem:[%s0] sm:$0xff]
  %v22 = vpack.c.bf16 %v21, %v21
  %v23 = vld [vmem:[%s4] sm:$0x1]
  %v24 = vld [vmem:[%s4 + $0x1] sm:$0x1]
  %v25 = vld [vmem:[%s4 + $0x2] sm:$0x1]
  %v26 = vld [vmem:[%s1] sm:$0xf]
  %v27 = vld [vmem:[%s1 + $0x4] sm:$0xf]
  %v28 = vlaneseq
  %v29 = vshrl.u32 %v28, 7
  %v30 = vsub.s32 0, %v29
  %v31 = vrot.slane %v23, %v30
  %v34 = vunpack.c.l.b16 %v26
  %v35 = vunpack.c.l.b16 %v27
  %v36 = vpack.c.b16 %v35, %v34
  %vm38 = vcmask 130048
  %v40 = vsel %vm38, %v22, 0
  %42 = vmatprep.subr.bf16.mxu0 0
  %43 = vmatpush1.bf16.msra.mxu0 0
  %44 = vmatprep.subr.bf16.mxu0 0
  %45 = vmatpush1.bf16.msra.mxu0 0
  %46 = vmatprep.subr.bf16.mxu0 0
  %47 = vmatpush1.bf16.msra.mxu0 0
  %48 = vmatprep.subr.bf16.mxu0 0
  %49 = vmatpush1.bf16.msra.mxu0 0
  %50 = vmatprep.subr.bf16.mxu0 0
  %51 = vmatpush1.bf16.msra.mxu0 0
  %52 = vmatprep.subr.bf16.mxu0 0
  %53 = vmatpush1.bf16.msra.mxu0 0
  %54 = vmatprep.subr.bf16.mxu0 0
  %55 = vmatpush1.bf16.msra.mxu0 0
  %56 = vmatprep.subr.bf16.mxu0 0
  %57 = vmatpush1.bf16.msra.mxu0 %v36
  %58 = vmatprep.subr.bf16.mxu0 0
  %59 = vmatpush2.bf16.msra.mxu0 0
  %60 = vmatprep.subr.bf16.mxu0 0
  %61 = vmatpush2.bf16.msra.mxu0 0
  %62 = vmatprep.subr.bf16.mxu0 0
  %63 = vmatpush2.bf16.msra.mxu0 0
  %64 = vmatprep.subr.bf16.mxu0 0
  %65 = vmatpush2.bf16.msra.mxu0 0
  %66 = vmatprep.subr.bf16.mxu0 0
  %67 = vmatpush2.bf16.msra.mxu0 0
  %68 = vmatprep.subr.bf16.mxu0 0
  %69 = vmatpush2.bf16.msra.mxu0 0
  %70 = vmatprep.subr.bf16.mxu0 0
  %71 = vmatpush2.bf16.msra.mxu0 0
  %72 = vmatprep.subr.bf16.mxu0 0
  %73 = vmatpush2.bf16.msra.mxu0 0
  %74 = vmatprep.mubr.bf16.mxu0 0
  %75 = vmatmul.mubr.bf16.gmra.mxu0 %v40
  %v76 = vpop.f32.mrf.mxu0
  %v77 = vadd.f32 %v31, %v76
  %v78 = vpop.f32.mrf.mxu0
  %v79 = vpop.f32.mrf.mxu0
  %v80 = vpop.f32.mrf.mxu0
  %81 = vdwg.mxu0
  %v82 = vmax.f32 %v77, 0.0
  %v83 = vpack.c.bf16 %v82, %v82
  %v84 = vld [vmem:[%s2] sm:$0xf]
  %v85 = vld [vmem:[%s2 + $0x4] sm:$0xf]
  %v86 = vld [vmem:[%s2 + $0x8] sm:$0xf]
  %v87 = vld [vmem:[%s2 + $0xc] sm:$0xf]
  %v88 = vld [vmem:[%s2 + $0x10] sm:$0xf]
  %v89 = vld [vmem:[%s2 + $0x14] sm:$0xf]
  %v90 = vld [vmem:[%s2 + $0x18] sm:$0xf]
  %v91 = vld [vmem:[%s2 + $0x1c] sm:$0xf]
  %v92 = vlaneseq
  %v93 = vshrl.u32 %v92, 7
  %v94 = vsub.s32 0, %v93
  %v95 = vrot.slane %v24, %v94
  %v104 = vunpack.c.l.b16 %v84
  %v105 = vunpack.c.l.b16 %v85
  %v106 = vunpack.c.l.b16 %v86
  %v107 = vunpack.c.l.b16 %v87
  %v108 = vunpack.c.l.b16 %v88
  %v109 = vunpack.c.l.b16 %v89
  %v110 = vunpack.c.l.b16 %v90
  %v111 = vunpack.c.l.b16 %v91
  %v112 = vpack.c.b16 %v105, %v104
  %v113 = vpack.c.b16 %v107, %v106
  %v114 = vpack.c.b16 %v109, %v108
  %v115 = vpack.c.b16 %v111, %v110
  %vm120 = vcmask 523264
  %v122 = vsel %vm120, %v83, 0
  %124 = vmatprep.subr.bf16.mxu0 0
  %125 = vmatpush1.bf16.msra.mxu0 0
  %126 = vmatprep.subr.bf16.mxu0 0
  %127 = vmatpush1.bf16.msra.mxu0 0
  %128 = vmatprep.subr.bf16.mxu0 0
  %129 = vmatpush1.bf16.msra.mxu0 0
  %130 = vmatprep.subr.bf16.mxu0 0
  %131 = vmatpush1.bf16.msra.mxu0 0
  %132 = vmatprep.subr.bf16.mxu0 0
  %133 = vmatpush1.bf16.msra.mxu0 %v115
  %134 = vmatprep.subr.bf16.mxu0 0
  %135 = vmatpush1.bf16.msra.mxu0 %v114
  %136 = vmatprep.subr.bf16.mxu0 0
  %137 = vmatpush1.bf16.msra.mxu0 %v113
  %138 = vmatprep.subr.bf16.mxu0 0
  %139 = vmatpush1.bf16.msra.mxu0 %v112
  %140 = vmatprep.subr.bf16.mxu0 0
  %141 = vmatpush2.bf16.msra.mxu0 0
  %142 = vmatprep.subr.bf16.mxu0 0
  %143 = vmatpush2.bf16.msra.mxu0 0
  %144 = vmatprep.subr.bf16.mxu0 0
  %145 = vmatpush2.bf16.msra.mxu0 0
  %146 = vmatprep.subr.bf16.mxu0 0
  %147 = vmatpush2.bf16.msra.mxu0 0
  %148 = vmatprep.subr.bf16.mxu0 0
  %149 = vmatpush2.bf16.msra.mxu0 0
  %150 = vmatprep.subr.bf16.mxu0 0
  %151 = vmatpush2.bf16.msra.mxu0 0
  %152 = vmatprep.subr.bf16.mxu0 0
  %153 = vmatpush2.bf16.msra.mxu0 0
  %154 = vmatprep.subr.bf16.mxu0 0
  %155 = vmatpush2.bf16.msra.mxu0 0
  %156 = vmatprep.mubr.bf16.mxu0 0
  %157 = vmatmul.mubr.bf16.gmra.mxu0 %v122
  %v158 = vpop.f32.mrf.mxu0
  %v159 = vadd.f32 %v95, %v158
  %v160 = vpop.f32.mrf.mxu0
  %v161 = vpop.f32.mrf.mxu0
  %v162 = vpop.f32.mrf.mxu0
  %163 = vdwg.mxu0
  %v164 = vmax.f32 %v159, 0.0
  %v165 = vpack.c.bf16 %v164, %v164
  %v166 = vld [vmem:[%s3] sm:$0xf]
  %v167 = vld [vmem:[%s3 + $0x4] sm:$0xf]
  %v168 = vld [vmem:[%s3 + $0x8] sm:$0xf]
  %v169 = vld [vmem:[%s3 + $0xc] sm:$0xf]
  %v170 = vld [vmem:[%s3 + $0x10] sm:$0xf]
  %v171 = vld [vmem:[%s3 + $0x14] sm:$0xf]
  %v172 = vld [vmem:[%s3 + $0x18] sm:$0xf]
  %v173 = vld [vmem:[%s3 + $0x1c] sm:$0xf]
  %v174 = vlaneseq
  %v175 = vshrl.u32 %v174, 7
  %v176 = vsub.s32 0, %v175
  %v177 = vrot.slane %v25, %v176
  %v186 = vunpack.c.l.b16 %v166
  %v187 = vunpack.c.l.b16 %v167
  %v188 = vunpack.c.l.b16 %v168
  %v189 = vunpack.c.l.b16 %v169
  %v190 = vunpack.c.l.b16 %v170
  %v191 = vunpack.c.l.b16 %v171
  %v192 = vunpack.c.l.b16 %v172
  %v193 = vunpack.c.l.b16 %v173
  %v194 = vpack.c.b16 %v187, %v186
  %v195 = vpack.c.b16 %v189, %v188
  %v196 = vpack.c.b16 %v191, %v190
  %v197 = vpack.c.b16 %v193, %v192
  %v203 = vsel %vm120, %v165, 0
  %205 = vmatprep.subr.bf16.mxu0 0
  %206 = vmatpush1.bf16.msra.mxu0 0
  %207 = vmatprep.subr.bf16.mxu0 0
  %208 = vmatpush1.bf16.msra.mxu0 0
  %209 = vmatprep.subr.bf16.mxu0 0
  %210 = vmatpush1.bf16.msra.mxu0 0
  %211 = vmatprep.subr.bf16.mxu0 0
  %212 = vmatpush1.bf16.msra.mxu0 0
  %213 = vmatprep.subr.bf16.mxu0 0
  %214 = vmatpush1.bf16.msra.mxu0 %v197
  %215 = vmatprep.subr.bf16.mxu0 0
  %216 = vmatpush1.bf16.msra.mxu0 %v196
  %217 = vmatprep.subr.bf16.mxu0 0
  %218 = vmatpush1.bf16.msra.mxu0 %v195
  %219 = vmatprep.subr.bf16.mxu0 0
  %220 = vmatpush1.bf16.msra.mxu0 %v194
  %221 = vmatprep.subr.bf16.mxu0 0
  %222 = vmatpush2.bf16.msra.mxu0 0
  %223 = vmatprep.subr.bf16.mxu0 0
  %224 = vmatpush2.bf16.msra.mxu0 0
  %225 = vmatprep.subr.bf16.mxu0 0
  %226 = vmatpush2.bf16.msra.mxu0 0
  %227 = vmatprep.subr.bf16.mxu0 0
  %228 = vmatpush2.bf16.msra.mxu0 0
  %229 = vmatprep.subr.bf16.mxu0 0
  %230 = vmatpush2.bf16.msra.mxu0 0
  %231 = vmatprep.subr.bf16.mxu0 0
  %232 = vmatpush2.bf16.msra.mxu0 0
  %233 = vmatprep.subr.bf16.mxu0 0
  %234 = vmatpush2.bf16.msra.mxu0 0
  %235 = vmatprep.subr.bf16.mxu0 0
  %236 = vmatpush2.bf16.msra.mxu0 0
  %237 = vmatprep.mubr.bf16.mxu0 0
  %238 = vmatmul.mubr.bf16.gmra.mxu0 %v203
  %v239 = vpop.f32.mrf.mxu0
  %v240 = vadd.f32 %v177, %v239
  %v241 = vpop.f32.mrf.mxu0
  %v242 = vpop.f32.mrf.mxu0
  %v243 = vpop.f32.mrf.mxu0
  %244 = vdwg.mxu0
  %v245 = vpack.c.bf16 %v240, %v240
  %vm246 = vcmask 60416
  %247 = vst.msk [vmem:[%s5] sm:$0xf] %vm246, %v245
  // Predicated region
  $region22: #{ppo_forward.1} parent=0 // pred_check
    _
  $region23: #{ppo_forward.1} parent=0 // pred_check_branch
    %249 = sbr.rel (0) target = $region25
  $region24: #{ppo_forward.1} parent=0 // pred_region
    _
  $region25: #{ppo_forward.1} parent=0 // pred_fallthru
    _
  // Predicated region
  $region26: #{ppo_forward.1} parent=0 // pred_check
    _
  $region27: #{ppo_forward.1} parent=0 // pred_check_branch
    %251 = sbr.rel (0) target = $region29
  $region28: #{ppo_forward.1} parent=0 // pred_region
    _
  $region29: #{ppo_forward.1} parent=0 // pred_fallthru
    _

</llo_original>
